<compile_context>
chip_gen: v6e
topology: v6e:2x2x1
jax: 0.10.0
libtpu: 0.0.40
codegen_flags: <defaults>
</compile_context>

<pallas_src>
import jax
import jax.numpy as jnp
from jax.experimental import pallas as pl
from jax.experimental.pallas import tpu as pltpu


def _round_up(a, m):
    return ((a + m - 1) // m) * m


def wavkan_kernel(x_ref, we_ref, be_ref, wcomb_ref, bcomb_ref, out_ref, psi_ref):
    """One batch tile.

    x_ref:     (TB, Fp)   input tile (feature dim zero-padded to a multiple of 8)
    we_ref:    (Fp, FHp)  block-diagonal psi expansion (Haar scale folded in)
    be_ref:    (1, FHp)   flattened psi biases (zero-padded)
    wcomb_ref: (1, FHp)   (W_sum @ W_phi) row vector (zero-padded)
    bcomb_ref: (1, 1)     b_sum @ W_phi + b_phi
    out_ref:   (TB, 1)
    psi_ref:   (TB, FHp)  lane-dense psi slab (feature-major columns)
    """
    # One small-K MXU pass produces the whole lane-dense psi slab (no concatenate,
    # no per-feature broadcasts, no cross-lane relayouts).
    psi_slab = jnp.maximum(
        jnp.dot(x_ref[...], we_ref[...], preferred_element_type=jnp.float32)
        + be_ref[...], 0.0)                                        # (TB, FHp) f32
    psi_ref[...] = psi_slab.astype(psi_ref.dtype)

    # phi folded into the sum layer: one full-width multiply + 128-lane reduce.
    out_ref[...] = jnp.sum(psi_slab * wcomb_ref[...], axis=-1, keepdims=True) \
        + bcomb_ref[...]                                           # (TB, 1)


def wavelet_kan_forward(x, params, *, wavelet_level=3, block_b=4096,
                        psi_dtype=jnp.float32):
    wpsi, bpsi, wsum, bsum, wphi, bphi = params
    B, F = x.shape
    H = wpsi.shape[-1]
    FH = F * H
    Fp = _round_up(F, 8)                       # aligned K for the MXU expansion
    FHp = _round_up(FH, 128)                   # lane-dense / unmasked psi stores
    scale = 2.0 ** (wavelet_level / 2.0)       # Haar cascade on a length-1 signal

    # Only row 0 of each psi weight/bias contributes (wavelet coeffs are [scale*v, 0, ...]).
    # Block-diagonal expansion so psi_cat = relu(x @ W_e + b_e) in one MXU pass.
    w0 = scale * wpsi[:, 0, :]                                         # (F, H)
    we_core = (jnp.eye(F, dtype=jnp.float32)[:, :, None] * w0[None]).reshape(F, FH)
    we = jnp.zeros((Fp, FHp), jnp.float32).at[:F, :FH].set(we_core)    # (Fp, FHp)
    be = jnp.zeros((1, FHp), jnp.float32).at[0, :FH].set(bpsi.reshape(FH))

    # Fold the phi layer into the sum layer.
    wcomb = jnp.zeros((1, FHp), jnp.float32).at[0, :FH].set((wsum @ wphi).reshape(FH))
    bcomb = (bsum @ wphi + bphi).reshape(1, 1)

    # Batch tiling: balanced tiles, >=2 grid steps whenever the batch permits so the
    # "parallel" grid axis can shard across both v7x TensorCores.
    b8 = _round_up(max(B, 1), 8)
    n_steps = max(1, -(-b8 // block_b))
    if b8 > 8 and n_steps < 2:
        n_steps = 2
    tb = _round_up(-(-b8 // n_steps), 8)
    b_pad = tb * n_steps

    x_p = x
    if b_pad != B or Fp != F:
        x_p = jnp.pad(x, ((0, b_pad - B), (0, Fp - F)))

    cost = pl.CostEstimate(
        flops=int(2 * b_pad * Fp * FHp + 3 * b_pad * FHp),
        transcendentals=0,
        bytes_accessed=int(4 * (b_pad * Fp + b_pad * FHp + b_pad
                                + Fp * FHp + 2 * FHp + 1)),
    )

    out, psi_slab = pl.pallas_call(
        wavkan_kernel,
        out_shape=(jax.ShapeDtypeStruct((b_pad, 1), jnp.float32),
                   jax.ShapeDtypeStruct((b_pad, FHp), psi_dtype)),
        grid=(n_steps,),
        in_specs=[
            pl.BlockSpec((tb, Fp), lambda i: (i, 0)),     # x: tiled over batch
            pl.BlockSpec((Fp, FHp), lambda i: (0, 0)),    # W_e: resident
            pl.BlockSpec((1, FHp), lambda i: (0, 0)),     # b_e: resident
            pl.BlockSpec((1, FHp), lambda i: (0, 0)),     # w_comb: resident
            pl.BlockSpec((1, 1), lambda i: (0, 0)),       # b_comb: resident
        ],
        out_specs=(
            pl.BlockSpec((tb, 1), lambda i: (i, 0)),      # out: tiled over batch
            pl.BlockSpec((tb, FHp), lambda i: (i, 0)),    # psi slab: lane-dense, tiled
        ),
        compiler_params=pltpu.CompilerParams(
            dimension_semantics=("parallel",),
            vmem_limit_bytes=32 * 1024 * 1024),
        cost_estimate=cost,
    )(x_p, we, be, wcomb, bcomb)

    out = out[:B]
    # Free reshape (no transpose / no extra HBM traffic): psi[:, i, :] == psi_outputs[i].
    psi = psi_slab[:B, :FH].reshape(B, F, H)
    return out, psi


def init_params(key, input_size, hidden_size, wavelet_level=3):
    """Deterministic PyTorch-Linear-style init: U(-1/sqrt(fan_in), 1/sqrt(fan_in))."""
    C = wavelet_level + 1
    F, H = input_size, hidden_size
    ks = jax.random.split(key, 6)

    def uni(k, shape, fan_in):
        bound = 1.0 / jnp.sqrt(jnp.float32(fan_in))
        return jax.random.uniform(k, shape, jnp.float32, -bound, bound)

    wpsi = uni(ks[0], (F, C, H), C)          # stacked psi_layers (weight transposed)
    bpsi = uni(ks[1], (F, 1, H), C)
    wsum = uni(ks[2], (H * F, H), H * F)     # sum_layer (weight transposed)
    bsum = uni(ks[3], (1, H), H * F)
    wphi = uni(ks[4], (H, 1), H)             # phi_layer (weight transposed)
    bphi = uni(ks[5], (1, 1), H)
    return (wpsi, bpsi, wsum, bsum, wphi, bphi)


def ref_forward(x, params, *, wavelet_level=3):
    """Pure-JAX reference mirroring the PyTorch forward (psi stacked as (B, F, H))."""
    wpsi, bpsi, wsum, bsum, wphi, bphi = params
    B, F = x.shape
    H = wpsi.shape[-1]
    C = wavelet_level + 1
    scale = 2.0 ** (wavelet_level / 2.0)
    wav = jnp.zeros((B, F, C), jnp.float32).at[:, :, 0].set(scale * x)
    psi = jax.nn.relu(jnp.einsum('bfc,fch->bfh', wav, wpsi) + bpsi[:, 0, :][None])
    psi_cat = psi.reshape(B, F * H)          # == torch.cat(psi_outputs, dim=1)
    summed = psi_cat @ wsum + bsum
    out = summed @ wphi + bphi
    return out, psi


if __name__ == "__main__":
    F, H, LEVEL = 4, 32, 3
    key = jax.random.PRNGKey(0)
    kx, kx2, kp = jax.random.split(key, 3)
    params = init_params(kp, F, H, LEVEL)

    ok = True
    for B, kk in ((8, kx), (10, kx2)):       # exercise single-step and multi-step/padded paths
        x = jax.random.normal(kk, (B, F), jnp.float32)
        out, psi = wavelet_kan_forward(x, params, wavelet_level=LEVEL)
        out = jax.block_until_ready(out)
        psi = jax.block_until_ready(psi)

        out_ref, psi_ref = ref_forward(x, params, wavelet_level=LEVEL)
        ok &= out.shape == (B, 1) and psi.shape == (B, F, H)
        ok &= bool(jnp.allclose(out, out_ref, atol=1e-5, rtol=1e-5))
        ok &= bool(jnp.allclose(psi, psi_ref, atol=1e-5, rtol=1e-5))

    assert ok
    print("KERNEL_OK")
</pallas_src>

<mosaic_0001>
module attributes {stable_mosaic.version = 11 : i64} {
  func.func @wavkan_kernel(%arg0: i32, %arg1: memref<8x8xf32, #tpu.memory_space<vmem>>, %arg2: memref<8x128xf32, #tpu.memory_space<vmem>>, %arg3: memref<1x128xf32, #tpu.memory_space<vmem>>, %arg4: memref<1x128xf32, #tpu.memory_space<vmem>>, %arg5: memref<1x1xf32, #tpu.memory_space<vmem>>, %arg6: memref<8x1xf32, #tpu.memory_space<vmem>>, %arg7: memref<8x128xf32, #tpu.memory_space<vmem>>) attributes {dimension_semantics = [#tpu.dimension_semantics<parallel>], iteration_bounds = array<i64: 1>, scalar_prefetch = 0 : i64, scratch_operands = 0 : i64, tpu.core_type = #tpu.core_type<tc>, window_params = [{transform_indices = @transform_0, window_bounds = array<i64: 8, 8>}, {pipeline_mode = #tpu.pipeline_mode<synchronous>, transform_indices = @transform_1, window_bounds = array<i64: 8, 128>}, {pipeline_mode = #tpu.pipeline_mode<synchronous>, transform_indices = @transform_2, window_bounds = array<i64: 1, 128>}, {pipeline_mode = #tpu.pipeline_mode<synchronous>, transform_indices = @transform_3, window_bounds = array<i64: 1, 128>}, {pipeline_mode = #tpu.pipeline_mode<synchronous>, transform_indices = @transform_4, window_bounds = array<i64: 1, 1>}, {transform_indices = @transform_5, window_bounds = array<i64: 8, 1>}, {transform_indices = @transform_6, window_bounds = array<i64: 8, 128>}]} {
    %c0 = arith.constant 0 : index
    %c0_0 = arith.constant 0 : index
    %0 = vector.load %arg1[%c0, %c0_0] : memref<8x8xf32, #tpu.memory_space<vmem>>, vector<8x8xf32>
    %c0_1 = arith.constant 0 : index
    %c0_2 = arith.constant 0 : index
    %1 = vector.load %arg2[%c0_1, %c0_2] : memref<8x128xf32, #tpu.memory_space<vmem>>, vector<8x128xf32>
    %cst = arith.constant dense<0.000000e+00> : vector<8x128xf32>
    %2 = tpu.matmul %0, %1, %cst {dimension_numbers = #tpu.dot_dimension_numbers<[1], [0], [0], [1], [0, 0, 1, 1], [], []>} : vector<8x8xf32>, vector<8x128xf32>, vector<8x128xf32> -> vector<8x128xf32>
    %c0_3 = arith.constant 0 : index
    %c0_4 = arith.constant 0 : index
    %3 = vector.load %arg3[%c0_3, %c0_4] : memref<1x128xf32, #tpu.memory_space<vmem>>, vector<1x128xf32>
    %4 = vector.broadcast %3 : vector<1x128xf32> to vector<8x128xf32>
    %5 = arith.addf %2, %4 : vector<8x128xf32>
    %cst_5 = arith.constant 0.000000e+00 : f32
    %6 = vector.broadcast %cst_5 : f32 to vector<8x128xf32>
    %7 = arith.maximumf %5, %6 : vector<8x128xf32>
    %c0_6 = arith.constant 0 : index
    %c0_7 = arith.constant 0 : index
    %8 = vector.load %arg7[%c0_6, %c0_7] : memref<8x128xf32, #tpu.memory_space<vmem>>, vector<8x128xf32>
    tpu.vector_store %arg7[%c0_6, %c0_7], %7 {strides = array<i32>} : memref<8x128xf32, #tpu.memory_space<vmem>>, vector<8x128xf32>,
    %c0_8 = arith.constant 0 : index
    %c0_9 = arith.constant 0 : index
    %9 = vector.load %arg4[%c0_8, %c0_9] : memref<1x128xf32, #tpu.memory_space<vmem>>, vector<1x128xf32>
    %10 = vector.broadcast %9 : vector<1x128xf32> to vector<8x128xf32>
    %11 = arith.mulf %7, %10 : vector<8x128xf32>
    %cst_10 = arith.constant dense<0.000000e+00> : vector<8xf32>
    %12 = vector.multi_reduction <add>, %11, %cst_10 [1] : vector<8x128xf32> to vector<8xf32>
    %13 = vector.shape_cast %12 : vector<8xf32> to vector<8x1xf32>
    %c0_11 = arith.constant 0 : index
    %c0_12 = arith.constant 0 : index
    %14 = vector.load %arg5[%c0_11, %c0_12] : memref<1x1xf32, #tpu.memory_space<vmem>>, vector<1x1xf32>
    %15 = vector.broadcast %14 : vector<1x1xf32> to vector<8x1xf32>
    %16 = arith.addf %13, %15 : vector<8x1xf32>
    %c0_13 = arith.constant 0 : index
    %c0_14 = arith.constant 0 : index
    %17 = vector.load %arg6[%c0_13, %c0_14] : memref<8x1xf32, #tpu.memory_space<vmem>>, vector<8x1xf32>
    tpu.vector_store %arg6[%c0_13, %c0_14], %16 {strides = array<i32>} : memref<8x1xf32, #tpu.memory_space<vmem>>, vector<8x1xf32>,
    return
  }
  func.func @transform_0(%arg0: i32) -> (i32, i32) {
    %c0_i32 = arith.constant 0 : i32
    %c0_i32_0 = arith.constant 0 : i32
    return %arg0, %c0_i32 : i32, i32
  }
  func.func @transform_1(%arg0: i32) -> (i32, i32) {
    %c0_i32 = arith.constant 0 : i32
    %c0_i32_0 = arith.constant 0 : i32
    %c0_i32_1 = arith.constant 0 : i32
    return %c0_i32, %c0_i32_0 : i32, i32
  }
  func.func @transform_2(%arg0: i32) -> (i32, i32) {
    %c0_i32 = arith.constant 0 : i32
    %c0_i32_0 = arith.constant 0 : i32
    %c0_i32_1 = arith.constant 0 : i32
    return %c0_i32, %c0_i32_0 : i32, i32
  }
  func.func @transform_3(%arg0: i32) -> (i32, i32) {
    %c0_i32 = arith.constant 0 : i32
    %c0_i32_0 = arith.constant 0 : i32
    %c0_i32_1 = arith.constant 0 : i32
    return %c0_i32, %c0_i32_0 : i32, i32
  }
  func.func @transform_4(%arg0: i32) -> (i32, i32) {
    %c0_i32 = arith.constant 0 : i32
    %c0_i32_0 = arith.constant 0 : i32
    %c0_i32_1 = arith.constant 0 : i32
    return %c0_i32, %c0_i32_0 : i32, i32
  }
  func.func @transform_5(%arg0: i32) -> (i32, i32) {
    %c0_i32 = arith.constant 0 : i32
    %c0_i32_0 = arith.constant 0 : i32
    return %arg0, %c0_i32 : i32, i32
  }
  func.func @transform_6(%arg0: i32) -> (i32, i32) {
    %c0_i32 = arith.constant 0 : i32
    %c0_i32_0 = arith.constant 0 : i32
    return %arg0, %c0_i32 : i32, i32
  }
}

</mosaic_0001>

<llo_original>
// kernel: tpu_custom_call.1
$region0: #{tpu_custom_call.1}
  #allocation0 [shape = 'u32[]', space=smem, size = 0x4, offset = 0x4, fixed_abs, tag = 'smem constant byte address 0x4 - core index']
  #allocation1 [shape = 'u32[144,128]{1,0:T(1,128)}', space=vmem, size = 0x12000, scoped, tag = 'internal scratch']
  #allocation2 [shape = 'f32[1,1]{1,0:T(1,128)S(1)}', space=vmem, size = 0x200, scoped, tag = 'scoped memory for tpu_custom_call.1']
  %s0 = inlined_call_operand.hbm [shape: f32[8,8], index: 0, kind: input, shape index: {}]
  %s1 = inlined_call_operand.hbm [shape: f32[8,128], index: 1, kind: input, shape index: {}]
  %s2 = inlined_call_operand.vmem [shape: f32[1,128], index: 2, kind: input, shape index: {}]
  %s3 = inlined_call_operand.vmem [shape: f32[1,128], index: 3, kind: input, shape index: {}]
  %s4 = inlined_call_operand.<no memory space> [shape: f32[1,1], index: 4, kind: input, shape index: {}]
  %s5 = inlined_call_operand.vmem [shape: f32[8,1], index: 5, kind: output, shape index: {0}]
  %s6 = inlined_call_operand.hbm [shape: f32[8,128], index: 6, kind: output, shape index: {1}]
  %7 = xla_tuple %s5, %s6
  %s8 = sld [smem:[#allocation0]]
  $region46: #{tpu_custom_call.1} parent=0
    _
  %s10 = ssub.s32 1, %s8
  %s11 = scalar_select 0, %s10, %s8
  %v12 = vstv %s4
  %13 = vst [vmem:[#allocation2] sm:$0x1] %v12
  $region1: #{tpu_custom_call.1} parent=0
    #allocation3 [shape = 'u8[4096]{0}', space=vmem, size = 0x1000, scoped, tag = 'input window, operand 0, single buffered']
    #allocation4 [shape = 's32[1]{0}', space=sflag, size = 0x4, scoped, tag = 'scoped memory for tpu_custom_call.1']
    #allocation5 [shape = 's32[1]{0}', space=sflag, size = 0x4, scoped, tag = 'scoped memory for tpu_custom_call.1']
    #allocation6 [shape = 'u8[4096]{0}', space=vmem, size = 0x1000, scoped, tag = 'input window, operand 1, single buffered']
    #allocation7 [shape = 's32[1]{0}', space=sflag, size = 0x4, scoped, tag = 'scoped memory for tpu_custom_call.1']
    #allocation8 [shape = 'u8[4096]{0}', space=vmem, size = 0x1000, scoped, tag = 'output window, operand 1, single buffered']
    %14 = vsyncpa [#allocation4], 0
    %15 = vsyncpa [#allocation7], 0
    %16 = vsyncpa [#allocation5], 0
    // Predicated region
    $region2: #{tpu_custom_call.1} parent=1 // pred_check
      _
    $region3: #{tpu_custom_call.1} parent=1 // pred_check_branch
      %18 = sbr.rel (0) target = $region5
    $region4: #{tpu_custom_call.1} parent=1 // pred_region
      %s20 = ssub.s32 128, 128
      %21 = vsyncadd [#allocation4], %s20
      %s23 = sshll.u32 [#allocation3], 4
      %s24 = int_to_ptr.vmem [resolvable:$true] %s23
      %26 = dma.hbm_to_vmem [thread:$0]  %s0, 128, %s24, [#allocation4]
    $region5: #{tpu_custom_call.1} parent=1 // pred_fallthru
      _
    // Predicated region
    $region6: #{tpu_custom_call.1} parent=1 // pred_check
      _
    $region7: #{tpu_custom_call.1} parent=1 // pred_check_branch
      %28 = sbr.rel (0) target = $region9
    $region8: #{tpu_custom_call.1} parent=1 // pred_region
      %s30 = ssub.s32 128, 128
      %31 = vsyncadd [#allocation7], %s30
      %s33 = sshll.u32 [#allocation6], 4
      %s34 = int_to_ptr.vmem [resolvable:$true] %s33
      %36 = dma.hbm_to_vmem [thread:$0]  %s1, 128, %s34, [#allocation7]
    $region9: #{tpu_custom_call.1} parent=1 // pred_fallthru
      _
    // Predicated region
    $region10: #{tpu_custom_call.1} parent=1 // pred_check
      _
    $region11: #{tpu_custom_call.1} parent=1 // pred_check_branch
      %38 = sbr.rel (0) target = $region13
    $region12: #{tpu_custom_call.1} parent=1 // pred_region
      _
    $region13: #{tpu_custom_call.1} parent=1 // pred_fallthru
      _
    // Predicated region
    $region14: #{tpu_custom_call.1} parent=1 // pred_check
      _
    $region15: #{tpu_custom_call.1} parent=1 // pred_check_branch
      %40 = sbr.rel (0) target = $region17
    $region16: #{tpu_custom_call.1} parent=1 // pred_region
      _
    $region17: #{tpu_custom_call.1} parent=1 // pred_fallthru
      _
    // Predicated region
    $region18: #{tpu_custom_call.1} parent=1 // pred_check
      _
    $region19: #{tpu_custom_call.1} parent=1 // pred_check_branch
      %42 = sbr.rel (0) target = $region21
    $region20: #{tpu_custom_call.1} parent=1 // pred_region
      _
    $region21: #{tpu_custom_call.1} parent=1 // pred_fallthru
      _
    // Predicated region
    $region22: #{tpu_custom_call.1} parent=1 // pred_check
      _
    $region23: #{tpu_custom_call.1} parent=1 // pred_check_branch
      %44 = sbr.rel (0) target = $region25
    $region24: #{tpu_custom_call.1} parent=1 // pred_region
      %45 = dma.done [#allocation4], 128
    $region25: #{tpu_custom_call.1} parent=1 // pred_fallthru
      _
    // Predicated region
    $region26: #{tpu_custom_call.1} parent=1 // pred_check
      _
    $region27: #{tpu_custom_call.1} parent=1 // pred_check_branch
      %47 = sbr.rel (0) target = $region29
    $region28: #{tpu_custom_call.1} parent=1 // pred_region
      %48 = dma.done [#allocation7], 128
    $region29: #{tpu_custom_call.1} parent=1 // pred_fallthru
      _
    %v49 = vld [vmem:[#allocation3] sm:$0xff]
    %v50 = vld [vmem:[#allocation6] sm:$0xff]
    %v51 = vld [vmem:[%s2] sm:$0x1]
    %v53 = vlaneseq
    %v54 = vshrl.u32 %v53, 7
    %v55 = vsub.s32 0, %v54
    %v56 = vrot.slane %v51, %v55
    %vm58 = vcmask 64512
    %v60 = vsel %vm58, %v49, 0
    %62 = vmatprep.subr.mxu0 0.0
    %63 = vmatpush1.msra.mxu0 0.0
    %64 = vmatprep.subr.mxu0 0.0
    %65 = vmatpush1.msra.mxu0 0.0
    %66 = vmatprep.subr.mxu0 0.0
    %67 = vmatpush1.msra.mxu0 0.0
    %68 = vmatprep.subr.mxu0 0.0
    %69 = vmatpush1.msra.mxu0 0.0
    %70 = vmatprep.subr.mxu0 0.0
    %71 = vmatpush1.msra.mxu0 0.0
    %72 = vmatprep.subr.mxu0 0.0
    %73 = vmatpush1.msra.mxu0 0.0
    %74 = vmatprep.subr.mxu0 0.0
    %75 = vmatpush1.msra.mxu0 0.0
    %76 = vmatprep.subr.mxu0 0.0
    %77 = vmatpush1.msra.mxu0 0.0
    %78 = vmatprep.subr.mxu0 0.0
    %79 = vmatpush1.msra.mxu0 0.0
    %80 = vmatprep.subr.mxu0 0.0
    %81 = vmatpush1.msra.mxu0 0.0
    %82 = vmatprep.subr.mxu0 0.0
    %83 = vmatpush1.msra.mxu0 0.0
    %84 = vmatprep.subr.mxu0 0.0
    %85 = vmatpush1.msra.mxu0 0.0
    %86 = vmatprep.subr.mxu0 0.0
    %87 = vmatpush1.msra.mxu0 0.0
    %88 = vmatprep.subr.mxu0 0.0
    %89 = vmatpush1.msra.mxu0 0.0
    %90 = vmatprep.subr.mxu0 0.0
    %91 = vmatpush1.msra.mxu0 0.0
    %92 = vmatprep.subr.mxu0 0.0
    %93 = vmatpush1.msra.mxu0 %v50
    %94 = vmatprep.subr.mxu0 0.0
    %95 = vmatpush2.msra.mxu0 0.0
    %96 = vmatprep.subr.mxu0 0.0
    %97 = vmatpush2.msra.mxu0 0.0
    %98 = vmatprep.subr.mxu0 0.0
    %99 = vmatpush2.msra.mxu0 0.0
    %100 = vmatprep.subr.mxu0 0.0
    %101 = vmatpush2.msra.mxu0 0.0
    %102 = vmatprep.subr.mxu0 0.0
    %103 = vmatpush2.msra.mxu0 0.0
    %104 = vmatprep.subr.mxu0 0.0
    %105 = vmatpush2.msra.mxu0 0.0
    %106 = vmatprep.subr.mxu0 0.0
    %107 = vmatpush2.msra.mxu0 0.0
    %108 = vmatprep.subr.mxu0 0.0
    %109 = vmatpush2.msra.mxu0 0.0
    %110 = vmatprep.subr.mxu0 0.0
    %111 = vmatpush2.msra.mxu0 0.0
    %112 = vmatprep.subr.mxu0 0.0
    %113 = vmatpush2.msra.mxu0 0.0
    %114 = vmatprep.subr.mxu0 0.0
    %115 = vmatpush2.msra.mxu0 0.0
    %116 = vmatprep.subr.mxu0 0.0
    %117 = vmatpush2.msra.mxu0 0.0
    %118 = vmatprep.subr.mxu0 0.0
    %119 = vmatpush2.msra.mxu0 0.0
    %120 = vmatprep.subr.mxu0 0.0
    %121 = vmatpush2.msra.mxu0 0.0
    %122 = vmatprep.subr.mxu0 0.0
    %123 = vmatpush2.msra.mxu0 0.0
    %124 = vmatprep.subr.mxu0 0.0
    %125 = vmatpush2.msra.mxu0 0.0
    %126 = vmatprep.mubr.f32.mxu0 0.0
    %127 = vmatmul.mubr.f32.gmra.mxu0 %v60
    %v128 = vpop.f32.mrf.mxu0
    %v129 = vadd.f32 %v56, %v128
    %v130 = vpop.f32.mrf.mxu0
    %131 = vdwg.mxu0
    %v132 = vmax.f32 %v129, 0.0
    %133 = vst [vmem:[#allocation8] sm:$0xff] %v132
    %v134 = vld [vmem:[%s3] sm:$0x1]
    %v136 = vlaneseq
    %v137 = vshrl.u32 %v136, 7
    %v138 = vsub.s32 0, %v137
    %v139 = vrot.slane %v134, %v138
    %v141 = vmul.f32 %v132, %v139
    %142 = vadd.xlane.f32.xlu0 %v141
    %v143 = vpop.xlane.xlu0 %142
    %v144 = vld [vmem:[#allocation2] sm:$0x1]
    %v146 = vlaneseq
    %v147 = vshrl.u32 %v146, 7
    %v148 = vsub.s32 0, %v147
    %v149 = vrot.slane %v144, %v148
    %v151 = vadd.f32 %v143, %v149
    %vm152 = vcmask 7168
    %153 = vst.msk [vmem:[%s5] sm:$0xff] %vm152, %v151
    // Predicated region
    $region30: #{tpu_custom_call.1} parent=1 // pred_check
      _
    $region31: #{tpu_custom_call.1} parent=1 // pred_check_branch
      %155 = sbr.rel (0) target = $region33
    $region32: #{tpu_custom_call.1} parent=1 // pred_region
      _
    $region33: #{tpu_custom_call.1} parent=1 // pred_fallthru
      _
    // Predicated region
    $region34: #{tpu_custom_call.1} parent=1 // pred_check
      _
    $region35: #{tpu_custom_call.1} parent=1 // pred_check_branch
      %157 = sbr.rel (0) target = $region37
    $region36: #{tpu_custom_call.1} parent=1 // pred_region
      %s159 = ssub.s32 128, 128
      %160 = vsyncadd [#allocation5], %s159
      %s162 = sshll.u32 [#allocation8], 4
      %s163 = int_to_ptr.vmem [resolvable:$true] %s162
      %165 = dma.vmem_to_hbm [thread:$0]  %s163, 128, %s6, [#allocation5]
    $region37: #{tpu_custom_call.1} parent=1 // pred_fallthru
      _
    // Predicated region
    $region38: #{tpu_custom_call.1} parent=1 // pred_check
      _
    $region39: #{tpu_custom_call.1} parent=1 // pred_check_branch
      %167 = sbr.rel (0) target = $region41
    $region40: #{tpu_custom_call.1} parent=1 // pred_region
      _
    $region41: #{tpu_custom_call.1} parent=1 // pred_fallthru
      _
    // Predicated region
    $region42: #{tpu_custom_call.1} parent=1 // pred_check
      _
    $region43: #{tpu_custom_call.1} parent=1 // pred_check_branch
      %169 = sbr.rel (0) target = $region45
    $region44: #{tpu_custom_call.1} parent=1 // pred_region
      %170 = dma.done [#allocation5], 128
    $region45: #{tpu_custom_call.1} parent=1 // pred_fallthru
      _
    %171 = vsyncpa [#allocation4], 1
    %172 = vsyncpa [#allocation7], 1
    %173 = vsyncpa [#allocation5], 1

</llo_original>
